<compile_context>
chip_gen: v5e
topology: v5e:2x2
jax: 0.10.0
libtpu: 0.0.40
codegen_flags: <defaults>
</compile_context>

<pallas_src>
import functools

import jax
import jax.numpy as jnp
from jax import lax
from jax.experimental import pallas as pl
from jax.experimental.pallas import tpu as pltpu


_EPS_SQ = 1e-24  # F.normalize eps=1e-12: max(||x||, eps) == sqrt(max(||x||^2, eps^2))


def _vmem_budget_bytes():
    """Generation-aware VMEM cap (physical minus headroom)."""
    try:
        phys = int(pltpu.get_tpu_info().vmem_capacity_bytes)
    except Exception:  # query unavailable -> assume the smallest (v7x) VMEM
        phys = 64 << 20
    if phys <= (64 << 20):
        return 48 << 20          # v7x: stay well under the 64 MiB physical
    return 100 << 20             # v5e / v6e: 128 MiB physical


def _pick_row_tile(b):
    """Row-block size: whole batch when small, else a <=256 divisor of B."""
    if b <= 256:
        return b
    for cand in (256, 128, 64, 32, 16, 8):
        if b % cand == 0:
            return cand
    return b


def _estimate_vmem(b, tb, tk, in_itemsize):
    return int(
        2 * (tb + b) * tk * in_itemsize   # double-buffered input tiles (f + a)
        + tb * b * 4                      # Gram / logits / probs accumulator
        + 3 * tb * b * 4                  # epilogue temporaries (iota mask etc.)
        + 8 * b * 4                       # small row/col vectors + outputs
        + (2 << 20))                      # slack


def _pick_k_tile(b, tb, d_pad, in_itemsize, budget):
    """Largest 128-multiple divisor of D that fits the VMEM budget."""
    cands = [m * 128 for m in range(d_pad // 128, 0, -1) if d_pad % (m * 128) == 0]
    for tk in cands:
        if _estimate_vmem(b, tb, tk, in_itemsize) <= budget:
            return tk
    return cands[-1]


def _make_kernel(temperature):
    inv_temp = 1.0 / float(temperature)
    # With unit-norm rows, logits lie in [-1/T, 1/T]; a constant shift of 1/T
    # keeps exp() in (exp(-2/T), 1]. Gate so exp(-2/T) is a *normal* f32
    # (2/T <= ~80  =>  T >= 0.025); smaller T uses the max-subtracted path.
    use_const_shift = float(temperature) >= 0.025

    def kernel(f_ref, a_ref, loc_ref, cmax_ref, csum_ref,
               g_acc, sqf_acc, sqa_acc):
        i = pl.program_id(0)          # row block
        k = pl.program_id(1)          # feature (reduction) block
        tb, bsz = g_acc.shape

        @pl.when(k == 0)
        def _init():
            g_acc[...] = jnp.zeros_like(g_acc)
            sqf_acc[...] = jnp.zeros_like(sqf_acc)
            sqa_acc[...] = jnp.zeros_like(sqa_acc)

        f_in = f_ref[...]
        a_in = a_ref[...]
        f32 = f_in.astype(jnp.float32)
        a32 = a_in.astype(jnp.float32)
        fb = f_in.astype(jnp.bfloat16)
        ab = a_in.astype(jnp.bfloat16)

        # Per-row partial ||f_i||^2 (lane reduce).
        sqf_acc[...] += jnp.sum(f32 * f32, axis=1, keepdims=True)

        # ||a_j||^2 directly in (1, B) row layout via a ones-matvec on the MXU
        # (single accumulator; no epilogue relayout, no duplicate lane reduce).
        a_sq = a32 * a32
        sqa_acc[...] += lax.dot_general(
            jnp.ones((1, a_sq.shape[1]), jnp.float32), a_sq,
            dimension_numbers=(((1,), (1,)), ((), ())),
            preferred_element_type=jnp.float32)

        # Raw Gram accumulation f @ a.T: transposed-RHS contraction, bf16
        # operands, f32 accumulate on the MXU (no explicit transpose).
        g_acc[...] += lax.dot_general(
            fb, ab, dimension_numbers=(((1,), (1,)), ((), ())),
            preferred_element_type=jnp.float32)

        @pl.when(k == pl.num_programs(1) - 1)
        def _finalize():
            # Fold 1/temperature into the row scale; rank-1 rescale in place.
            inv_nf = lax.rsqrt(jnp.maximum(sqf_acc[...], _EPS_SQ)) * inv_temp  # (tb,1)
            inv_na = lax.rsqrt(jnp.maximum(sqa_acc[...], _EPS_SQ))             # (1, B)
            g_acc[...] = g_acc[...] * inv_nf * inv_na       # g_acc now holds logits S
            s = g_acc[...]

            # Diagonal S[i, i] straight off the logits (exact vs. what is exp'ed).
            row_ids = lax.broadcasted_iota(jnp.int32, (tb, bsz), 0) + i * tb
            col_ids = lax.broadcasted_iota(jnp.int32, (tb, bsz), 1)
            diag = jnp.sum(jnp.where(row_ids == col_ids, s, 0.0),
                           axis=1, keepdims=True)                               # (tb,1)

            ones_row = jnp.ones((1, tb), jnp.float32)
            if use_const_shift:
                shift = inv_temp
                g_acc[...] = jnp.exp(s - shift)             # g_acc now holds exp(S-1/T)
                p = g_acc[...]
                lse_row = shift + jnp.log(jnp.sum(p, axis=1, keepdims=True))    # (tb,1)
                # Column partial sums on the MXU instead of an axis-0 XLU reduce.
                col_sum = lax.dot_general(
                    ones_row, p, dimension_numbers=(((1,), (0,)), ((), ())),
                    preferred_element_type=jnp.float32)                         # (1, B)
                col_max = jnp.full((1, bsz), shift, jnp.float32)
            else:
                # Small-temperature fallback: classic max-subtracted LSE.
                m_row = jnp.max(s, axis=1, keepdims=True)
                lse_row = m_row + jnp.log(
                    jnp.sum(jnp.exp(s - m_row), axis=1, keepdims=True))
                m_col = jnp.max(s, axis=0, keepdims=True)                       # (1, B)
                col_sum = lax.dot_general(
                    ones_row, jnp.exp(s - m_col),
                    dimension_numbers=(((1,), (0,)), ((), ())),
                    preferred_element_type=jnp.float32)
                col_max = m_col

            # Everything local to this row block folds into one scalar:
            # sum_i (0.5 * lse_row_i - S_ii); the column LSE is combined
            # across row blocks outside the kernel from (col_max, col_sum).
            loc_ref[...] = jnp.reshape(jnp.sum(0.5 * lse_row - diag), (1, 1, 1))
            cmax_ref[...] = jnp.reshape(col_max, (1, 1, bsz))
            csum_ref[...] = jnp.reshape(col_sum, (1, 1, bsz))

    return kernel


@functools.partial(jax.jit, static_argnums=(2, 3, 4))
def contrastive_loss(features, augmented_features, temperature=0.07,
                     row_block=None, k_block=None):
    """features, augmented_features: [B, D]. Returns scalar f32 InfoNCE loss."""
    assert features.shape == augmented_features.shape
    b, d = features.shape

    # Zero-pad D to a lane-friendly multiple of 128 (exact: zero columns add
    # nothing to the squared norms or to the Gram matrix).
    d_pad = ((d + 127) // 128) * 128
    if d_pad != d:
        pad = ((0, 0), (0, d_pad - d))
        features = jnp.pad(features, pad)
        augmented_features = jnp.pad(augmented_features, pad)

    in_itemsize = max(features.dtype.itemsize, augmented_features.dtype.itemsize)
    budget = _vmem_budget_bytes()

    tb = row_block if row_block is not None else _pick_row_tile(b)
    assert b % tb == 0, (b, tb)
    tk = k_block if k_block is not None else _pick_k_tile(b, tb, d_pad,
                                                          in_itemsize, budget)
    assert d_pad % tk == 0, (d_pad, tk)
    nb, nk = b // tb, d_pad // tk

    vmem_limit = int(min(budget,
                         max(16 << 20, _estimate_vmem(b, tb, tk, in_itemsize))))

    kernel = _make_kernel(temperature)

    loc, cmax, csum = pl.pallas_call(
        kernel,
        out_shape=(
            jax.ShapeDtypeStruct((nb, 1, 1), jnp.float32),
            jax.ShapeDtypeStruct((nb, 1, b), jnp.float32),
            jax.ShapeDtypeStruct((nb, 1, b), jnp.float32),
        ),
        grid_spec=pltpu.PrefetchScalarGridSpec(
            num_scalar_prefetch=0,
            grid=(nb, nk),
            in_specs=[
                pl.BlockSpec((tb, tk), lambda i, k: (i, k)),
                pl.BlockSpec((b, tk), lambda i, k: (0, k)),
            ],
            out_specs=[
                pl.BlockSpec((1, 1, 1), lambda i, k: (i, 0, 0)),
                pl.BlockSpec((1, 1, b), lambda i, k: (i, 0, 0)),
                pl.BlockSpec((1, 1, b), lambda i, k: (i, 0, 0)),
            ],
            scratch_shapes=[
                pltpu.VMEM((tb, b), jnp.float32),   # Gram -> logits -> probs (in place)
                pltpu.VMEM((tb, 1), jnp.float32),   # ||f_i||^2
                pltpu.VMEM((1, b), jnp.float32),    # ||a_j||^2 (row layout)
            ],
        ),
        compiler_params=pltpu.CompilerParams(
            dimension_semantics=("parallel", "arbitrary"),   # rows parallel, K reduction
            vmem_limit_bytes=vmem_limit,
        ),
    )(features, augmented_features)

    # Cross-row-block combine for the column logsumexp (tiny, done in JAX).
    cmax = cmax.reshape(nb, b)
    csum = csum.reshape(nb, b)
    m = jnp.max(cmax, axis=0)
    lse_col = m + jnp.log(jnp.sum(jnp.exp(cmax - m[None, :]) * csum, axis=0))

    # loss = 0.5*(mean(lse_row) + mean(lse_col)) - mean(diag)
    return jnp.sum(loc) / b + 0.5 * jnp.mean(lse_col)


def _reference_loss(features, augmented_features, temperature=0.07):
    """Pure-JAX reference for correctness checking."""
    def norm(x):
        n = jnp.sqrt(jnp.sum(x * x, axis=1, keepdims=True))
        return x / jnp.maximum(n, 1e-12)

    f = norm(features.astype(jnp.float32))
    a = norm(augmented_features.astype(jnp.float32))
    s = f @ a.T / temperature
    b = s.shape[0]

    def ce(logits):
        lse = jax.scipy.special.logsumexp(logits, axis=1)
        return jnp.mean(lse - logits[jnp.arange(b), jnp.arange(b)])

    return 0.5 * (ce(s) + ce(s.T))


if __name__ == "__main__":
    key = jax.random.PRNGKey(0)

    def run_case(batch, dim, temperature=0.07, **kw):
        k1, k2 = jax.random.split(jax.random.fold_in(key, batch * 1000 + dim))
        f = jax.random.normal(k1, (batch, dim), jnp.float32)
        a = f + 0.1 * jax.random.normal(k2, (batch, dim), jnp.float32)
        loss = jax.block_until_ready(
            contrastive_loss(f, a, temperature, *(), **kw))
        ref = _reference_loss(f, a, temperature)
        assert jnp.isfinite(loss), (batch, dim, kw, loss)
        # bf16 MXU operands perturb the logits slightly -> loosened tolerance.
        assert jnp.allclose(loss, ref, rtol=2e-2, atol=2e-2), (
            batch, dim, temperature, kw, loss, ref)
        return loss

    run_case(8, 384)                        # single block on both grid axes
    run_case(8, 384, k_block=128)           # K-tiled reduction (nk = 3)
    run_case(16, 256, row_block=8)          # 2 row blocks + cross-block col-LSE combine
    run_case(8, 200)                        # D zero-padded to 256
    run_case(8, 128, temperature=0.01)      # small-T max-subtracted fallback path

    print("KERNEL_OK")
</pallas_src>

<mosaic_0001>
module attributes {stable_mosaic.version = 11 : i64} {
  func.func @kernel(%arg0: i32, %arg1: i32, %arg2: memref<8x384xf32, #tpu.memory_space<vmem>>, %arg3: memref<8x384xf32, #tpu.memory_space<vmem>>, %arg4: memref<1x1x1xf32, #tpu.memory_space<vmem>>, %arg5: memref<1x1x8xf32, #tpu.memory_space<vmem>>, %arg6: memref<1x1x8xf32, #tpu.memory_space<vmem>>, %arg7: memref<8x8xf32, #tpu.memory_space<vmem>>, %arg8: memref<8x1xf32, #tpu.memory_space<vmem>>, %arg9: memref<1x8xf32, #tpu.memory_space<vmem>>) attributes {dimension_semantics = [#tpu.dimension_semantics<parallel>, #tpu.dimension_semantics<arbitrary>], iteration_bounds = array<i64: 1, 1>, scalar_prefetch = 0 : i64, scratch_operands = 3 : i64, tpu.core_type = #tpu.core_type<tc>, window_params = [{transform_indices = @transform_0, window_bounds = array<i64: 8, 384>}, {transform_indices = @transform_1, window_bounds = array<i64: 8, 384>}, {transform_indices = @transform_2, window_bounds = array<i64: 1, 1, 1>}, {transform_indices = @transform_3, window_bounds = array<i64: 1, 1, 8>}, {transform_indices = @transform_4, window_bounds = array<i64: 1, 1, 8>}]} {
    %c0_i32 = arith.constant 0 : i32
    %0 = arith.cmpi eq, %arg1, %c0_i32 : i32
    %1 = arith.extui %0 : i1 to i32
    %c0_i32_0 = arith.constant 0 : i32
    %2 = arith.cmpi ne, %1, %c0_i32_0 : i32
    scf.if %2 {
      %cst_21 = arith.constant 0.000000e+00 : f32
      %26 = vector.broadcast %cst_21 : f32 to vector<8x8xf32>
      %c0_22 = arith.constant 0 : index
      %c0_23 = arith.constant 0 : index
      %27 = vector.load %arg7[%c0_22, %c0_23] : memref<8x8xf32, #tpu.memory_space<vmem>>, vector<8x8xf32>
      tpu.vector_store %arg7[%c0_22, %c0_23], %26 {strides = array<i32>} : memref<8x8xf32, #tpu.memory_space<vmem>>, vector<8x8xf32>,
      %cst_24 = arith.constant 0.000000e+00 : f32
      %28 = vector.broadcast %cst_24 : f32 to vector<8x1xf32>
      %c0_25 = arith.constant 0 : index
      %c0_26 = arith.constant 0 : index
      %29 = vector.load %arg8[%c0_25, %c0_26] : memref<8x1xf32, #tpu.memory_space<vmem>>, vector<8x1xf32>
      tpu.vector_store %arg8[%c0_25, %c0_26], %28 {strides = array<i32>} : memref<8x1xf32, #tpu.memory_space<vmem>>, vector<8x1xf32>,
      %cst_27 = arith.constant 0.000000e+00 : f32
      %30 = vector.broadcast %cst_27 : f32 to vector<1x8xf32>
      %c0_28 = arith.constant 0 : index
      %c0_29 = arith.constant 0 : index
      %31 = vector.load %arg9[%c0_28, %c0_29] : memref<1x8xf32, #tpu.memory_space<vmem>>, vector<1x8xf32>
      tpu.vector_store %arg9[%c0_28, %c0_29], %30 {strides = array<i32>} : memref<1x8xf32, #tpu.memory_space<vmem>>, vector<1x8xf32>,
    } else {
    }
    %c0 = arith.constant 0 : index
    %c0_1 = arith.constant 0 : index
    %3 = vector.load %arg2[%c0, %c0_1] : memref<8x384xf32, #tpu.memory_space<vmem>>, vector<8x384xf32>
    %c0_2 = arith.constant 0 : index
    %c0_3 = arith.constant 0 : index
    %4 = vector.load %arg3[%c0_2, %c0_3] : memref<8x384xf32, #tpu.memory_space<vmem>>, vector<8x384xf32>
    %5 = arith.truncf %3 : vector<8x384xf32> to vector<8x384xbf16>
    %6 = arith.truncf %4 : vector<8x384xf32> to vector<8x384xbf16>
    %c0_4 = arith.constant 0 : index
    %c0_5 = arith.constant 0 : index
    %7 = vector.load %arg8[%c0_4, %c0_5] : memref<8x1xf32, #tpu.memory_space<vmem>>, vector<8x1xf32>
    %8 = arith.mulf %3, %3 : vector<8x384xf32>
    %cst = arith.constant dense<0.000000e+00> : vector<8xf32>
    %9 = vector.multi_reduction <add>, %8, %cst [1] : vector<8x384xf32> to vector<8xf32>
    %10 = vector.shape_cast %9 : vector<8xf32> to vector<8x1xf32>
    %11 = arith.addf %7, %10 : vector<8x1xf32>
    %c0_6 = arith.constant 0 : index
    %c0_7 = arith.constant 0 : index
    %12 = vector.load %arg8[%c0_6, %c0_7] : memref<8x1xf32, #tpu.memory_space<vmem>>, vector<8x1xf32>
    tpu.vector_store %arg8[%c0_6, %c0_7], %11 {strides = array<i32>} : memref<8x1xf32, #tpu.memory_space<vmem>>, vector<8x1xf32>,
    %13 = arith.mulf %4, %4 : vector<8x384xf32>
    %c0_8 = arith.constant 0 : index
    %c0_9 = arith.constant 0 : index
    %14 = vector.load %arg9[%c0_8, %c0_9] : memref<1x8xf32, #tpu.memory_space<vmem>>, vector<1x8xf32>
    %cst_10 = arith.constant 1.000000e+00 : f32
    %15 = vector.broadcast %cst_10 : f32 to vector<1x384xf32>
    %cst_11 = arith.constant dense<0.000000e+00> : vector<1x8xf32>
    %16 = tpu.matmul %15, %13, %cst_11 {dimension_numbers = #tpu.dot_dimension_numbers<[1], [1], [0], [0], [0, 0, 1, 0], [], []>} : vector<1x384xf32>, vector<8x384xf32>, vector<1x8xf32> -> vector<1x8xf32>
    %17 = arith.addf %14, %16 : vector<1x8xf32>
    %c0_12 = arith.constant 0 : index
    %c0_13 = arith.constant 0 : index
    %18 = vector.load %arg9[%c0_12, %c0_13] : memref<1x8xf32, #tpu.memory_space<vmem>>, vector<1x8xf32>
    tpu.vector_store %arg9[%c0_12, %c0_13], %17 {strides = array<i32>} : memref<1x8xf32, #tpu.memory_space<vmem>>, vector<1x8xf32>,
    %c0_14 = arith.constant 0 : index
    %c0_15 = arith.constant 0 : index
    %19 = vector.load %arg7[%c0_14, %c0_15] : memref<8x8xf32, #tpu.memory_space<vmem>>, vector<8x8xf32>
    %cst_16 = arith.constant dense<0.000000e+00> : vector<8x8xf32>
    %20 = tpu.matmul %5, %6, %cst_16 {dimension_numbers = #tpu.dot_dimension_numbers<[1], [1], [0], [0], [0, 0, 1, 0], [], []>} : vector<8x384xbf16>, vector<8x384xbf16>, vector<8x8xf32> -> vector<8x8xf32>
    %21 = arith.addf %19, %20 : vector<8x8xf32>
    %c0_17 = arith.constant 0 : index
    %c0_18 = arith.constant 0 : index
    %22 = vector.load %arg7[%c0_17, %c0_18] : memref<8x8xf32, #tpu.memory_space<vmem>>, vector<8x8xf32>
    tpu.vector_store %arg7[%c0_17, %c0_18], %21 {strides = array<i32>} : memref<8x8xf32, #tpu.memory_space<vmem>>, vector<8x8xf32>,
    %c0_i32_19 = arith.constant 0 : i32
    %23 = arith.cmpi eq, %arg1, %c0_i32_19 : i32
    %24 = arith.extui %23 : i1 to i32
    %c0_i32_20 = arith.constant 0 : i32
    %25 = arith.cmpi ne, %24, %c0_i32_20 : i32
    scf.if %25 {
      %c0_21 = arith.constant 0 : index
      %c0_22 = arith.constant 0 : index
      %26 = vector.load %arg8[%c0_21, %c0_22] : memref<8x1xf32, #tpu.memory_space<vmem>>, vector<8x1xf32>
      %cst_23 = arith.constant 1.000000e-24 : f32
      %27 = vector.broadcast %cst_23 : f32 to vector<8x1xf32>
      %28 = arith.maximumf %26, %27 : vector<8x1xf32>
      %29 = math.rsqrt %28 : vector<8x1xf32>
      %cst_24 = arith.constant 14.2857141 : f32
      %30 = vector.broadcast %cst_24 : f32 to vector<8x1xf32>
      %31 = arith.mulf %29, %30 : vector<8x1xf32>
      %c0_25 = arith.constant 0 : index
      %c0_26 = arith.constant 0 : index
      %32 = vector.load %arg9[%c0_25, %c0_26] : memref<1x8xf32, #tpu.memory_space<vmem>>, vector<1x8xf32>
      %cst_27 = arith.constant 1.000000e-24 : f32
      %33 = vector.broadcast %cst_27 : f32 to vector<1x8xf32>
      %34 = arith.maximumf %32, %33 : vector<1x8xf32>
      %35 = math.rsqrt %34 : vector<1x8xf32>
      %c0_28 = arith.constant 0 : index
      %c0_29 = arith.constant 0 : index
      %36 = vector.load %arg7[%c0_28, %c0_29] : memref<8x8xf32, #tpu.memory_space<vmem>>, vector<8x8xf32>
      %37 = vector.broadcast %31 : vector<8x1xf32> to vector<8x8xf32>
      %38 = arith.mulf %36, %37 : vector<8x8xf32>
      %39 = vector.broadcast %35 : vector<1x8xf32> to vector<8x8xf32>
      %40 = arith.mulf %38, %39 : vector<8x8xf32>
      %c0_30 = arith.constant 0 : index
      %c0_31 = arith.constant 0 : index
      %41 = vector.load %arg7[%c0_30, %c0_31] : memref<8x8xf32, #tpu.memory_space<vmem>>, vector<8x8xf32>
      tpu.vector_store %arg7[%c0_30, %c0_31], %40 {strides = array<i32>} : memref<8x8xf32, #tpu.memory_space<vmem>>, vector<8x8xf32>,
      %c0_32 = arith.constant 0 : index
      %c0_33 = arith.constant 0 : index
      %42 = vector.load %arg7[%c0_32, %c0_33] : memref<8x8xf32, #tpu.memory_space<vmem>>, vector<8x8xf32>
      %43 = tpu.iota {dimensions = array<i32: 0>} : vector<8x8xi32>
      %c8_i32 = arith.constant 8 : i32
      %44 = arith.muli %arg0, %c8_i32 : i32
      %45 = vector.broadcast %44 : i32 to vector<8x8xi32>
      %46 = arith.addi %43, %45 : vector<8x8xi32>
      %47 = tpu.iota {dimensions = array<i32: 1>} : vector<8x8xi32>
      %48 = arith.cmpi eq, %46, %47 : vector<8x8xi32>
      %cst_34 = arith.constant 0.000000e+00 : f32
      %49 = vector.broadcast %cst_34 : f32 to vector<8x8xf32>
      %50 = arith.select %48, %42, %49 : vector<8x8xi1>, vector<8x8xf32>
      %cst_35 = arith.constant dense<0.000000e+00> : vector<8xf32>
      %51 = vector.multi_reduction <add>, %50, %cst_35 [1] : vector<8x8xf32> to vector<8xf32>
      %52 = vector.shape_cast %51 : vector<8xf32> to vector<8x1xf32>
      %cst_36 = arith.constant 1.000000e+00 : f32
      %53 = vector.broadcast %cst_36 : f32 to vector<1x8xf32>
      %cst_37 = arith.constant 14.2857141 : f32
      %54 = vector.broadcast %cst_37 : f32 to vector<8x8xf32>
      %55 = arith.subf %42, %54 : vector<8x8xf32>
      %56 = math.exp %55 : vector<8x8xf32>
      %c0_38 = arith.constant 0 : index
      %c0_39 = arith.constant 0 : index
      %57 = vector.load %arg7[%c0_38, %c0_39] : memref<8x8xf32, #tpu.memory_space<vmem>>, vector<8x8xf32>
      tpu.vector_store %arg7[%c0_38, %c0_39], %56 {strides = array<i32>} : memref<8x8xf32, #tpu.memory_space<vmem>>, vector<8x8xf32>,
      %c0_40 = arith.constant 0 : index
      %c0_41 = arith.constant 0 : index
      %58 = vector.load %arg7[%c0_40, %c0_41] : memref<8x8xf32, #tpu.memory_space<vmem>>, vector<8x8xf32>
      %cst_42 = arith.constant dense<0.000000e+00> : vector<8xf32>
      %59 = vector.multi_reduction <add>, %58, %cst_42 [1] : vector<8x8xf32> to vector<8xf32>
      %60 = vector.shape_cast %59 : vector<8xf32> to vector<8x1xf32>
      %61 = math.log %60 : vector<8x1xf32>
      %cst_43 = arith.constant 14.2857141 : f32
      %62 = vector.broadcast %cst_43 : f32 to vector<8x1xf32>
      %63 = arith.addf %62, %61 : vector<8x1xf32>
      %cst_44 = arith.constant dense<0.000000e+00> : vector<1x8xf32>
      %64 = tpu.matmul %53, %58, %cst_44 {dimension_numbers = #tpu.dot_dimension_numbers<[1], [0], [0], [1], [0, 0, 1, 1], [], []>} : vector<1x8xf32>, vector<8x8xf32>, vector<1x8xf32> -> vector<1x8xf32>
      %cst_45 = arith.constant 14.2857141 : f32
      %65 = vector.broadcast %cst_45 : f32 to vector<1x8xf32>
      %cst_46 = arith.constant 5.000000e-01 : f32
      %66 = vector.broadcast %cst_46 : f32 to vector<8x1xf32>
      %67 = arith.mulf %66, %63 : vector<8x1xf32>
      %68 = arith.subf %67, %52 : vector<8x1xf32>
      %69 = vector.shape_cast %68 : vector<8x1xf32> to vector<1x8x1xf32>
      %cst_47 = arith.constant dense<0.000000e+00> : vector<1xf32>
      %70 = vector.multi_reduction <add>, %69, %cst_47 [1, 2] : vector<1x8x1xf32> to vector<1xf32>
      %71 = vector.shape_cast %70 : vector<1xf32> to vector<1x1x1xf32>
      %72 = vector.extract %71[0, 0, 0] : f32 from vector<1x1x1xf32>
      %73 = vector.broadcast %72 : f32 to vector<1x1x1xf32>
      %c0_48 = arith.constant 0 : index
      %c0_49 = arith.constant 0 : index
      %c0_50 = arith.constant 0 : index
      %74 = vector.load %arg4[%c0_48, %c0_49, %c0_50] : memref<1x1x1xf32, #tpu.memory_space<vmem>>, vector<1x1x1xf32>
      tpu.vector_store %arg4[%c0_48, %c0_49, %c0_50], %73 {strides = array<i32>} : memref<1x1x1xf32, #tpu.memory_space<vmem>>, vector<1x1x1xf32>,
      %75 = vector.shape_cast %65 : vector<1x8xf32> to vector<1x1x8xf32>
      %c0_51 = arith.constant 0 : index
      %c0_52 = arith.constant 0 : index
      %c0_53 = arith.constant 0 : index
      %76 = vector.load %arg5[%c0_51, %c0_52, %c0_53] : memref<1x1x8xf32, #tpu.memory_space<vmem>>, vector<1x1x8xf32>
      tpu.vector_store %arg5[%c0_51, %c0_52, %c0_53], %75 {strides = array<i32>} : memref<1x1x8xf32, #tpu.memory_space<vmem>>, vector<1x1x8xf32>,
      %77 = vector.shape_cast %64 : vector<1x8xf32> to vector<1x1x8xf32>
      %c0_54 = arith.constant 0 : index
      %c0_55 = arith.constant 0 : index
      %c0_56 = arith.constant 0 : index
      %78 = vector.load %arg6[%c0_54, %c0_55, %c0_56] : memref<1x1x8xf32, #tpu.memory_space<vmem>>, vector<1x1x8xf32>
      tpu.vector_store %arg6[%c0_54, %c0_55, %c0_56], %77 {strides = array<i32>} : memref<1x1x8xf32, #tpu.memory_space<vmem>>, vector<1x1x8xf32>,
    } else {
    }
    return
  }
  func.func @transform_0(%arg0: i32, %arg1: i32) -> (i32, i32) {
    %c0_i32 = arith.constant 0 : i32
    return %arg0, %arg1 : i32, i32
  }
  func.func @transform_1(%arg0: i32, %arg1: i32) -> (i32, i32) {
    %c0_i32 = arith.constant 0 : i32
    %c0_i32_0 = arith.constant 0 : i32
    return %c0_i32, %arg1 : i32, i32
  }
  func.func @transform_2(%arg0: i32, %arg1: i32) -> (i32, i32, i32) {
    %c0_i32 = arith.constant 0 : i32
    %c0_i32_0 = arith.constant 0 : i32
    %c0_i32_1 = arith.constant 0 : i32
    return %arg0, %c0_i32, %c0_i32_0 : i32, i32, i32
  }
  func.func @transform_3(%arg0: i32, %arg1: i32) -> (i32, i32, i32) {
    %c0_i32 = arith.constant 0 : i32
    %c0_i32_0 = arith.constant 0 : i32
    %c0_i32_1 = arith.constant 0 : i32
    return %arg0, %c0_i32, %c0_i32_0 : i32, i32, i32
  }
  func.func @transform_4(%arg0: i32, %arg1: i32) -> (i32, i32, i32) {
    %c0_i32 = arith.constant 0 : i32
    %c0_i32_0 = arith.constant 0 : i32
    %c0_i32_1 = arith.constant 0 : i32
    return %arg0, %c0_i32, %c0_i32_0 : i32, i32, i32
  }
}

</mosaic_0001>

<llo_original>
// kernel: contrastive_loss.1
$region0: #{contrastive_loss.1}
  #allocation0 [shape = 'u32[]', space=smem, size = 0x4, offset = 0x4, fixed_abs, tag = 'smem constant byte address 0x4 - core index']
  #allocation1 [shape = 'u32[72,128]{1,0:T(1,128)}', space=vmem, size = 0x9000, scoped, tag = 'internal scratch']
  #allocation2 [shape = 'f32[8,8]{1,0:T(8,128)}', space=vmem, size = 0x1000, scoped, tag = 'scratch operand']
  #allocation3 [shape = 'f32[8,1]{1,0:T(8,128)}', space=vmem, size = 0x1000, scoped, tag = 'scratch operand']
  #allocation4 [shape = 'f32[1,8]{1,0:T(1,128)}', space=vmem, size = 0x200, scoped, tag = 'scratch operand']
  %s0 = inlined_call_operand.hbm [shape: f32[8,384], index: 0, kind: input, shape index: {}]
  %s1 = inlined_call_operand.hbm [shape: f32[8,384], index: 1, kind: input, shape index: {}]
  %s2 = inlined_call_operand.hbm [shape: f32[1,1,1], index: 2, kind: output, shape index: {0}]
  %s3 = inlined_call_operand.vmem [shape: f32[1,1,8], index: 3, kind: output, shape index: {1}]
  %s4 = inlined_call_operand.vmem [shape: f32[1,1,8], index: 4, kind: output, shape index: {2}]
  %5 = xla_tuple %s2, %s3, %s4
  %s6 = sld [smem:[#allocation0]]
  $region50: #{contrastive_loss.1} parent=0
    _
  %s8 = ssub.s32 1, %s6
  %s9 = scalar_select 0, %s8, %s6
  $region1: #{contrastive_loss.1} parent=0
    #allocation5 [shape = 'u8[12288]{0}', space=vmem, size = 0x3000, scoped, tag = 'input window, operand 0, single buffered']
    #allocation6 [shape = 's32[1]{0}', space=sflag, size = 0x4, scoped, tag = 'scoped memory for contrastive_loss.1']
    #allocation7 [shape = 's32[1]{0}', space=sflag, size = 0x4, scoped, tag = 'scoped memory for contrastive_loss.1']
    #allocation8 [shape = 'u8[12288]{0}', space=vmem, size = 0x3000, scoped, tag = 'input window, operand 1, single buffered']
    #allocation9 [shape = 's32[1]{0}', space=sflag, size = 0x4, scoped, tag = 'scoped memory for contrastive_loss.1']
    #allocation10 [shape = 'u8[512]{0}', space=vmem, size = 0x400, scoped, tag = 'output window, operand 0, single buffered']
    %10 = vsyncpa [#allocation6], 0
    %11 = vsyncpa [#allocation9], 0
    %12 = vsyncpa [#allocation7], 0
    // Predicated region
    $region2: #{contrastive_loss.1} parent=1 // pred_check
      _
    $region3: #{contrastive_loss.1} parent=1 // pred_check_branch
      %14 = sbr.rel (0) target = $region5
    $region4: #{contrastive_loss.1} parent=1 // pred_region
      %16 = vsyncadd [#allocation6], 0
      %s18 = sshll.u32 %s0, 4
      %s19 = int_to_ptr.hbm [resolvable:$true] %s18
      %s20 = sshll.u32 [#allocation5], 4
      %s21 = int_to_ptr.vmem [resolvable:$true] %s20
      %23 = dma.hbm_to_vmem [thread:$0]  %s19, 384, %s21, [#allocation6]
    $region5: #{contrastive_loss.1} parent=1 // pred_fallthru
      _
    // Predicated region
    $region6: #{contrastive_loss.1} parent=1 // pred_check
      _
    $region7: #{contrastive_loss.1} parent=1 // pred_check_branch
      %25 = sbr.rel (0) target = $region9
    $region8: #{contrastive_loss.1} parent=1 // pred_region
      %27 = vsyncadd [#allocation9], 0
      %s29 = sshll.u32 %s1, 4
      %s30 = int_to_ptr.hbm [resolvable:$true] %s29
      %s31 = sshll.u32 [#allocation8], 4
      %s32 = int_to_ptr.vmem [resolvable:$true] %s31
      %34 = dma.hbm_to_vmem [thread:$0]  %s30, 384, %s32, [#allocation9]
    $region9: #{contrastive_loss.1} parent=1 // pred_fallthru
      _
    // Predicated region
    $region10: #{contrastive_loss.1} parent=1 // pred_check
      _
    $region11: #{contrastive_loss.1} parent=1 // pred_check_branch
      %36 = sbr.rel (0) target = $region13
    $region12: #{contrastive_loss.1} parent=1 // pred_region
      %38 = dma.done [#allocation6], 384
    $region13: #{contrastive_loss.1} parent=1 // pred_fallthru
      _
    // Predicated region
    $region14: #{contrastive_loss.1} parent=1 // pred_check
      _
    $region15: #{contrastive_loss.1} parent=1 // pred_check_branch
      %40 = sbr.rel (0) target = $region17
    $region16: #{contrastive_loss.1} parent=1 // pred_region
      %42 = dma.done [#allocation9], 384
    $region17: #{contrastive_loss.1} parent=1 // pred_fallthru
      _
    %p44 = scmp.eq.s32.totalorder 0, 0
    // Predicated region
    $region18: #{contrastive_loss.1} parent=1 // pred_check
      %p45 = pneg %p44
    $region19: #{contrastive_loss.1} parent=1 // pred_check_branch
      %47 = sbr.rel (%p45) target = $region21
    $region20: #{contrastive_loss.1} parent=1 // pred_region
      %vm48 = vcmask 64512
      %49 = vst.msk [vmem:[#allocation2] sm:$0xff] %vm48, 0.0
      %vm50 = vcmask 7168
      %51 = vst.msk [vmem:[#allocation3] sm:$0xff] %vm50, 0.0
      %vm52 = vcmask 57344
      %53 = vst.msk [vmem:[#allocation4] sm:$0x1] %vm52, 0.0
    $region21: #{contrastive_loss.1} parent=1 // pred_fallthru
      _
    %v54 = vld [vmem:[#allocation5] sm:$0xff]
    %v55 = vld [vmem:[#allocation5 + $0x8] sm:$0xff]
    %v56 = vld [vmem:[#allocation5 + $0x10] sm:$0xff]
    %v57 = vld [vmem:[#allocation8] sm:$0xff]
    %v58 = vld [vmem:[#allocation8 + $0x8] sm:$0xff]
    %v59 = vld [vmem:[#allocation8 + $0x10] sm:$0xff]
    %v60 = vpack.c.bf16 %v54, %v54
    %v61 = vpack.c.bf16 %v55, %v55
    %v62 = vpack.c.bf16 %v56, %v56
    %v63 = vpack.c.bf16 %v57, %v57
    %v64 = vpack.c.bf16 %v58, %v58
    %v65 = vpack.c.bf16 %v59, %v59
    %v66 = vld [vmem:[#allocation3] sm:$0xff]
    %v67 = vmul.f32 %v54, %v54
    %v68 = vmul.f32 %v55, %v55
    %v69 = vmul.f32 %v56, %v56
    %v70 = vadd.f32 %v67, %v68
    %v71 = vadd.f32 %v70, %v69
    %72 = vadd.xlane.f32.xlu0 %v71
    %v73 = vpop.xlane.xlu0 %72
    %v74 = vadd.f32 %v66, %v73
    %vm75 = vcmask 7168
    %76 = vst.msk [vmem:[#allocation3] sm:$0xff] %vm75, %v74
    %v77 = vmul.f32 %v57, %v57
    %v78 = vmul.f32 %v58, %v58
    %v79 = vmul.f32 %v59, %v59
    %v80 = vld [vmem:[#allocation4] sm:$0x1]
    %81 = vmatpush.xpose.msra.mxu0 0.0
    %82 = vmatpush.xpose.msra.mxu0 0.0
    %83 = vmatpush.xpose.msra.mxu0 0.0
    %84 = vmatpush.xpose.msra.mxu0 0.0
    %85 = vmatpush.xpose.msra.mxu0 0.0
    %86 = vmatpush.xpose.msra.mxu0 0.0
    %87 = vmatpush.xpose.msra.mxu0 0.0
    %88 = vmatpush.xpose.msra.mxu0 0.0
    %89 = vmatpush.xpose.msra.mxu0 0.0
    %90 = vmatpush.xpose.msra.mxu0 0.0
    %91 = vmatpush.xpose.msra.mxu0 0.0
    %92 = vmatpush.xpose.msra.mxu0 0.0
    %93 = vmatpush.xpose.msra.mxu0 0.0
    %94 = vmatpush.xpose.msra.mxu0 0.0
    %95 = vmatpush.xpose.msra.mxu0 0.0
    %96 = vmatpush.xpose.msra.mxu0 %v77
    %97 = vmatmul.f32.gmra.mxu0 1.0
    %v98 = vpop.f32.mrf.mxu0
    %v99 = vadd.f32 0.0, %v98
    %100 = vdwg.mxu0
    %101 = vmatpush.xpose.msra.mxu0 0.0
    %102 = vmatpush.xpose.msra.mxu0 0.0
    %103 = vmatpush.xpose.msra.mxu0 0.0
    %104 = vmatpush.xpose.msra.mxu0 0.0
    %105 = vmatpush.xpose.msra.mxu0 0.0
    %106 = vmatpush.xpose.msra.mxu0 0.0
    %107 = vmatpush.xpose.msra.mxu0 0.0
    %108 = vmatpush.xpose.msra.mxu0 0.0
    %109 = vmatpush.xpose.msra.mxu0 0.0
    %110 = vmatpush.xpose.msra.mxu0 0.0
    %111 = vmatpush.xpose.msra.mxu0 0.0
    %112 = vmatpush.xpose.msra.mxu0 0.0
    %113 = vmatpush.xpose.msra.mxu0 0.0
    %114 = vmatpush.xpose.msra.mxu0 0.0
    %115 = vmatpush.xpose.msra.mxu0 0.0
    %116 = vmatpush.xpose.msra.mxu0 %v78
    %117 = vmatmul.f32.gmra.mxu0 1.0
    %v118 = vpop.f32.mrf.mxu0
    %v119 = vadd.f32 %v99, %v118
    %120 = vdwg.mxu0
    %121 = vmatpush.xpose.msra.mxu0 0.0
    %122 = vmatpush.xpose.msra.mxu0 0.0
    %123 = vmatpush.xpose.msra.mxu0 0.0
    %124 = vmatpush.xpose.msra.mxu0 0.0
    %125 = vmatpush.xpose.msra.mxu0 0.0
    %126 = vmatpush.xpose.msra.mxu0 0.0
    %127 = vmatpush.xpose.msra.mxu0 0.0
    %128 = vmatpush.xpose.msra.mxu0 0.0
    %129 = vmatpush.xpose.msra.mxu0 0.0
    %130 = vmatpush.xpose.msra.mxu0 0.0
    %131 = vmatpush.xpose.msra.mxu0 0.0
    %132 = vmatpush.xpose.msra.mxu0 0.0
    %133 = vmatpush.xpose.msra.mxu0 0.0
    %134 = vmatpush.xpose.msra.mxu0 0.0
    %135 = vmatpush.xpose.msra.mxu0 0.0
    %136 = vmatpush.xpose.msra.mxu0 %v79
    %137 = vmatmul.f32.gmra.mxu0 1.0
    %v138 = vpop.f32.mrf.mxu0
    %v139 = vadd.f32 %v119, %v138
    %140 = vdwg.mxu0
    %v141 = vadd.f32 %v80, %v139
    %vm142 = vcmask 57344
    %143 = vst.msk [vmem:[#allocation4] sm:$0x1] %vm142, %v141
    %v144 = vld [vmem:[#allocation2] sm:$0xff]
    %145 = vmatpush.bf16.xpose.msra.mxu0 0
    %146 = vmatpush.bf16.xpose.msra.mxu0 0
    %147 = vmatpush.bf16.xpose.msra.mxu0 0
    %148 = vmatpush.bf16.xpose.msra.mxu0 0
    %149 = vmatpush.bf16.xpose.msra.mxu0 0
    %150 = vmatpush.bf16.xpose.msra.mxu0 0
    %151 = vmatpush.bf16.xpose.msra.mxu0 0
    %152 = vmatpush.bf16.xpose.msra.mxu0 %v63
    %153 = vmatmul.bf16.gmra.mxu0 %v60
    %v154 = vpop.f32.mrf.mxu0
    %v155 = vadd.f32 0.0, %v154
    %v156 = vpop.f32.mrf.mxu0
    %157 = vdwg.mxu0
    %158 = vmatpush.bf16.xpose.msra.mxu0 0
    %159 = vmatpush.bf16.xpose.msra.mxu0 0
    %160 = vmatpush.bf16.xpose.msra.mxu0 0
    %161 = vmatpush.bf16.xpose.msra.mxu0 0
    %162 = vmatpush.bf16.xpose.msra.mxu0 0
    %163 = vmatpush.bf16.xpose.msra.mxu0 0
    %164 = vmatpush.bf16.xpose.msra.mxu0 0
    %165 = vmatpush.bf16.xpose.msra.mxu0 %v64
    %166 = vmatmul.bf16.gmra.mxu0 %v61
    %v167 = vpop.f32.mrf.mxu0
    %v168 = vadd.f32 %v155, %v167
    %v169 = vpop.f32.mrf.mxu0
    %170 = vdwg.mxu0
    %171 = vmatpush.bf16.xpose.msra.mxu0 0
    %172 = vmatpush.bf16.xpose.msra.mxu0 0
    %173 = vmatpush.bf16.xpose.msra.mxu0 0
    %174 = vmatpush.bf16.xpose.msra.mxu0 0
    %175 = vmatpush.bf16.xpose.msra.mxu0 0
    %176 = vmatpush.bf16.xpose.msra.mxu0 0
    %177 = vmatpush.bf16.xpose.msra.mxu0 0
    %178 = vmatpush.bf16.xpose.msra.mxu0 %v65
    %179 = vmatmul.bf16.gmra.mxu0 %v62
    %v180 = vpop.f32.mrf.mxu0
    %v181 = vadd.f32 %v168, %v180
    %v182 = vpop.f32.mrf.mxu0
    %183 = vdwg.mxu0
    %v184 = vadd.f32 %v144, %v181
    %vm185 = vcmask 64512
    %186 = vst.msk [vmem:[#allocation2] sm:$0xff] %vm185, %v184
    // Predicated region
    $region22: #{contrastive_loss.1} parent=1 // pred_check
      %p187 = pneg %p44
    $region23: #{contrastive_loss.1} parent=1 // pred_check_branch
      %189 = sbr.rel (%p187) target = $region25
    $region24: #{contrastive_loss.1} parent=1 // pred_region
      %v190 = vld [vmem:[#allocation3] sm:$0xff]
      %v191 = vmax.f32 %v190, 1e-24
      %v192 = vrsqrt.pop %v191
      %v193 = vmul.f32 %v192, %v191
      %v194 = vmul.f32 %v193, %v192
      %v195 = vmul.f32 0.5, %v194
      %v196 = vsub.f32 1.5, %v195
      %v197 = vmul.f32 %v192, %v196
      %vm198 = vweird.f32 %v191
      %vm199 = vweird.f32 %v192
      %vm200 = vmor %vm198, %vm199
      %v201 = vsel %vm200, %v192, %v197
      %v202 = vmul.f32 %v201, 14.285714
      %v203 = vld [vmem:[#allocation4] sm:$0x1]
      %v204 = vmax.f32 %v203, 1e-24
      %v205 = vrsqrt.pop %v204
      %v206 = vmul.f32 %v205, %v204
      %v207 = vmul.f32 %v206, %v205
      %v208 = vmul.f32 0.5, %v207
      %v209 = vsub.f32 1.5, %v208
      %v210 = vmul.f32 %v205, %v209
      %vm211 = vweird.f32 %v204
      %vm212 = vweird.f32 %v205
      %vm213 = vmor %vm211, %vm212
      %v214 = vsel %vm213, %v205, %v210
      %v215 = vld [vmem:[#allocation2] sm:$0xff]
      %217 = vset.pattern.permute.xlu0 0
      %218 = vperm.xlu0 %217, %v202
      %v219 = vpop.permute.xlu0 %218
      %v221 = vmul.f32 %v215, %v219
      %v223 = vperm.slane %v214, 0
      %v225 = vmul.f32 %v221, %v223
      %226 = vst.msk [vmem:[#allocation2] sm:$0xff] %vm185, %v225
      %v227 = vld [vmem:[#allocation2] sm:$0xff]
      %v228 = vlaneseq
      %v229 = vshrl.u32 %v228, 7
      %s230 = smul.u32 0, 8
      %v231 = vstv %s230
      %v232 = vadd.s32 %v229, %v231
      %v233 = vlaneseq
      %v234 = vand.u32 %v233, 127
      %vm235 = vcmp.eq.s32.totalorder %v232, %v234
      %v236 = vsel %vm235, %v227, 0.0
      %v237 = vsel %vm185, %v236, 0.0
      %238 = vadd.xlane.f32.xlu0 %v237
      %v239 = vpop.xlane.xlu0 %238
      %v240 = vsub.f32 %v227, 14.285714
      %v241 = vmul.f32 %v240, 1.442695
      %v242 = vpow.pop %v241
      %243 = vst.msk [vmem:[#allocation2] sm:$0xff] %vm185, %v242
      %v244 = vld [vmem:[#allocation2] sm:$0xff]
      %v245 = vsel %vm185, %v244, 0.0
      %246 = vadd.xlane.f32.xlu0 %v245
      %v247 = vpop.xlane.xlu0 %246
      %v248 = vlog2.pop %v247
      %v249 = vmul.f32 %v248, 0.6931472
      %v250 = vadd.f32 %v249, 14.285714
      %v252 = vsel %vm185, 1.0, 0
      %254 = vmatpush.msra.mxu0 0.0
      %255 = vmatpush.msra.mxu0 0.0
      %256 = vmatpush.msra.mxu0 0.0
      %257 = vmatpush.msra.mxu0 0.0
      %258 = vmatpush.msra.mxu0 0.0
      %259 = vmatpush.msra.mxu0 0.0
      %260 = vmatpush.msra.mxu0 0.0
      %261 = vmatpush.msra.mxu0 0.0
      %262 = vmatpush.msra.mxu0 0.0
      %263 = vmatpush.msra.mxu0 0.0
      %264 = vmatpush.msra.mxu0 0.0
      %265 = vmatpush.msra.mxu0 0.0
      %266 = vmatpush.msra.mxu0 0.0
      %267 = vmatpush.msra.mxu0 0.0
      %268 = vmatpush.msra.mxu0 0.0
      %269 = vmatpush.msra.mxu0 %v244
      %270 = vmatmul.f32.gmra.mxu0 %v252
      %v271 = vpop.f32.mrf.mxu0
      %v272 = vadd.f32 0.0, %v271
      %273 = vdwg.mxu0
      %v274 = vmul.f32 %v250, 0.5
      %v275 = vsub.f32 %v274, %v239
      %v276 = vsel %vm75, %v275, 0.0
      %277 = vadd.xlane.f32.xlu0 %v276
      %v278 = vpop.xlane.xlu0 %277
      %v279 = vrot.slane %v278, 4
      %v280 = vadd.f32 %v278, %v279
      %v281 = vrot.slane %v280, 2
      %v282 = vadd.f32 %v280, %v281
      %v283 = vrot.slane %v282, 1
      %v284 = vadd.f32 %v282, %v283
      %s285 = vtos %v284
      %v286 = vstv %s285
      %vm287 = vcmask 0
      %288 = vst.msk [vmem:[#allocation10] sm:$0x1] %vm287, %v286
      %289 = vst.msk [vmem:[%s3] sm:$0x1] %vm142, 14.285714
      %290 = vst.msk [vmem:[%s4] sm:$0x1] %vm142, %v272
    $region25: #{contrastive_loss.1} parent=1 // pred_fallthru
      _
    // Predicated region
    $region26: #{contrastive_loss.1} parent=1 // pred_check
      _
    $region27: #{contrastive_loss.1} parent=1 // pred_check_branch
      %292 = sbr.rel (0) target = $region29
    $region28: #{contrastive_loss.1} parent=1 // pred_region
      %294 = vsyncadd [#allocation7], 0
      %s296 = sshll.u32 [#allocation10], 4
      %s297 = int_to_ptr.vmem [resolvable:$true] %s296
      %s298 = sshll.u32 %s2, 4
      %s299 = int_to_ptr.hbm [resolvable:$true] %s298
      %301 = dma.vmem_to_hbm [thread:$0]  %s297, 16, %s299, [#allocation7]
    $region29: #{contrastive_loss.1} parent=1 // pred_fallthru
      _
    // Predicated region
    $region30: #{contrastive_loss.1} parent=1 // pred_check
      _
    $region31: #{contrastive_loss.1} parent=1 // pred_check_branch
      %303 = sbr.rel (0) target = $region33
    $region32: #{contrastive_loss.1} parent=1 // pred_region
      _
    $region33: #{contrastive_loss.1} parent=1 // pred_fallthru
      _
    // Predicated region
    $region34: #{contrastive_loss.1} parent=1 // pred_check
      _
    $region35: #{contrastive_loss.1} parent=1 // pred_check_branch
      %305 = sbr.rel (0) target = $region37
    $region36: #{contrastive_loss.1} parent=1 // pred_region
      _
    $region37: #{contrastive_loss.1} parent=1 // pred_fallthru
      _
    // Predicated region
    $region38: #{contrastive_loss.1} parent=1 // pred_check
      _
    $region39: #{contrastive_loss.1} parent=1 // pred_check_branch
      %307 = sbr.rel (0) target = $region41
    $region40: #{contrastive_loss.1} parent=1 // pred_region
      %309 = dma.done [#allocation7], 16
    $region41: #{contrastive_loss.1} parent=1 // pred_fallthru
      _
    // Predicated region
    $region42: #{contrastive_loss.1} parent=1 // pred_check
      _
    $region43: #{contrastive_loss.1} parent=1 // pred_check_branch
      %311 = sbr.rel (0) target = $region45
    $region44: #{contrastive_loss.1} parent=1 // pred_region
      _
    $region45: #{contrastive_loss.1} parent=1 // pred_fallthru
      _
    // Predicated region
    $region46: #{contrastive_loss.1} parent=1 // pred_check
      _
    $region47: #{contrastive_loss.1} parent=1 // pred_check_branch
      %313 = sbr.rel (0) target = $region49
    $region48: #{contrastive_loss.1} parent=1 // pred_region
      _
    $region49: #{contrastive_loss.1} parent=1 // pred_fallthru
      _
    %314 = vsyncpa [#allocation6], 1
    %315 = vsyncpa [#allocation9], 1
    %316 = vsyncpa [#allocation7], 1

</llo_original>
